<compile_context>
chip_gen: v7x
topology: tpu7x:2x2x1
jax: 0.10.0
libtpu: 0.0.40
codegen_flags: <defaults>
</compile_context>

<pallas_src>
import functools

import jax
import jax.numpy as jnp
from jax.experimental import pallas as pl
from jax.experimental.pallas import tpu as pltpu

OUT_PAD = 128        # lane-dense padded width of the final FC output
SUBLANE = 8          # batch padding multiple
K_ALIGN = 128        # contraction-dim padding multiple (keeps MXU feeds tile-aligned)


def _bilstm_kernel(x_ref, w1_ref, w2fc_hbm, b_ref, out_ref, w2fc_vmem, sem):
    """Whole forward pass in one kernel (everything fits comfortably in VMEM).

    x_ref    : (B, K_pad)           f32, VMEM
    w1_ref   : (K_pad, 6H)          bf16, VMEM   (layer-1, dirs fused, f-gate dropped)
    w2fc_hbm : (2H, 6H + OUT_PAD)   bf16, HBM    ([layer-2 | FC]; fetched manually, overlapped)
    b_ref    : (1, 12H + OUT_PAD)   f32, VMEM    ([b1 | b2 | bfc])
    out_ref  : (B, OUT_PAD)         f32, VMEM
    """
    # Kick off the layer-2 / FC weight fetch immediately; wait only after layer-1 compute.
    w2fc_copy = pltpu.make_async_copy(w2fc_hbm, w2fc_vmem, sem)
    w2fc_copy.start()

    six_h = w1_ref.shape[1]      # 6 * hidden (static Python int)
    G = six_h // 3               # 2 * hidden = fused gate-group width (128-lane aligned)

    def sigmoid(v):
        # Exact identity sigmoid(v) = 0.5 * tanh(0.5 * v) + 0.5 -> one EUP push per vreg.
        return 0.5 * jnp.tanh(0.5 * v) + 0.5

    def gate_mix(gates):
        # Columns interleaved as [i_f i_b | g_f g_b | o_f o_b]; h0 = c0 = 0 so the recurrent
        # term and the forget gate are gone; result is directly [h_fwd | h_bwd].
        i = sigmoid(gates[:, 0 * G:1 * G])
        g = jnp.tanh(gates[:, 1 * G:2 * G])
        o = sigmoid(gates[:, 2 * G:3 * G])
        return o * jnp.tanh(i * g)                       # c = i * g since f * c0 == 0

    # Default-precision f32 matmul truncates to one bf16 MXU pass anyway; cast explicitly.
    x = x_ref[...].astype(jnp.bfloat16)

    # Layer 1 (both directions in a single MXU pass).
    h1 = gate_mix(jnp.dot(x, w1_ref[...], preferred_element_type=jnp.float32)
                  + b_ref[:, 0:six_h])
    # TODO(synk): inter-layer dropout (p=0.5) is training-only in nn.LSTM -> identity here.

    # Layer-2 / FC weights have been streaming in while layer 1 ran.
    w2fc_copy.wait()

    # Layer 2 (static 128-aligned ref slices of the packed buffer are free views).
    h2 = gate_mix(jnp.dot(h1.astype(jnp.bfloat16), w2fc_vmem[:, 0:six_h],
                          preferred_element_type=jnp.float32)
                  + b_ref[:, six_h:2 * six_h])

    # Final linear + sigmoid (lane-dense OUT_PAD-wide unmasked store).
    logits = (jnp.dot(h2.astype(jnp.bfloat16), w2fc_vmem[:, six_h:],
                      preferred_element_type=jnp.float32)
              + b_ref[:, 2 * six_h:])
    out_ref[...] = sigmoid(logits).astype(out_ref.dtype)


@functools.partial(jax.jit, static_argnames=("output_size",))
def bilstm_forward(x, params, output_size):
    """x: (B, input_size) float32. params: packed/fused kernel-layout weights (see pack_params)."""
    batch, in_dim = x.shape
    w1, w2fc, b = params["w1"], params["w2fc"], params["b"]

    pad_b = (-batch) % SUBLANE
    pad_k = w1.shape[0] - in_dim          # contraction dim pre-padded to K_ALIGN in pack_params
    if pad_b or pad_k:
        x = jnp.pad(x, ((0, pad_b), (0, pad_k)))
    padded_batch = batch + pad_b

    vmem = pl.BlockSpec(memory_space=pltpu.MemorySpace.VMEM)
    hbm = pl.BlockSpec(memory_space=pl.ANY)

    six_h = w1.shape[1]
    two_h = w2fc.shape[0]
    cost = pl.CostEstimate(
        flops=2 * padded_batch * (w1.shape[0] * six_h + two_h * six_h + two_h * OUT_PAD),
        transcendentals=padded_batch * (8 * (six_h // 3) + OUT_PAD),
        bytes_accessed=(x.size * 4 + w1.size * 2 + w2fc.size * 2 + b.size * 4
                        + padded_batch * OUT_PAD * 4),
    )

    out = pl.pallas_call(
        _bilstm_kernel,
        out_shape=jax.ShapeDtypeStruct((padded_batch, OUT_PAD), jnp.float32),
        in_specs=[vmem, vmem, hbm, vmem],
        out_specs=vmem,
        scratch_shapes=[pltpu.VMEM(w2fc.shape, w2fc.dtype),   # landing buffer for [w2 | wfc]
                        pltpu.SemaphoreType.DMA],
        cost_estimate=cost,
    )(x, w1, w2fc, b)
    return out[:batch, :output_size]


# ----------------------------------------------------------------------------------------------
# Parameter construction (PyTorch-layout raw weights) and packing into the fused kernel layout.
# ----------------------------------------------------------------------------------------------
def init_torch_style_params(key, input_size, hidden_size, output_size, num_layers=2):
    """Raw weights exactly in PyTorch nn.LSTM / nn.Linear layout (gates ordered i,f,g,o)."""
    n_dir_layers = num_layers * 2
    ks = list(jax.random.split(key, n_dir_layers * 4 + 2))
    bound = 1.0 / jnp.sqrt(hidden_size)

    def u(k, shape, bnd):
        return jax.random.uniform(k, shape, jnp.float32, -bnd, bnd)

    raw = {}
    ki = 0
    for layer in range(num_layers):
        in_dim = input_size if layer == 0 else 2 * hidden_size
        for suffix in ("", "_r"):  # forward / reverse direction
            raw[f"w_ih_l{layer}{suffix}"] = u(ks[ki + 0], (4 * hidden_size, in_dim), bound)
            raw[f"w_hh_l{layer}{suffix}"] = u(ks[ki + 1], (4 * hidden_size, hidden_size), bound)
            raw[f"b_ih_l{layer}{suffix}"] = u(ks[ki + 2], (4 * hidden_size,), bound)
            raw[f"b_hh_l{layer}{suffix}"] = u(ks[ki + 3], (4 * hidden_size,), bound)
            ki += 4
    fc_bound = 1.0 / jnp.sqrt(2 * hidden_size)
    raw["fc_w"] = u(ks[ki + 0], (output_size, 2 * hidden_size), fc_bound)
    raw["fc_b"] = u(ks[ki + 1], (output_size,), fc_bound)
    return raw


def pack_params(raw, input_size, hidden_size, output_size):
    """Fuse directions, drop the dead f-gate, interleave gates, pack into 3 buffers, cast to bf16."""
    H = hidden_size

    def gate_cols(w_ih, b_ih, b_hh):
        # PyTorch rows ordered [i; f; g; o]; drop f (c0 == 0); fold the two biases.
        b = b_ih + b_hh
        return ((w_ih[0:H].T, w_ih[2 * H:3 * H].T, w_ih[3 * H:4 * H].T),
                (b[0:H], b[2 * H:3 * H], b[3 * H:4 * H]))

    def fuse_layer(layer):
        fw_w, fw_b = gate_cols(raw[f"w_ih_l{layer}"], raw[f"b_ih_l{layer}"],
                               raw[f"b_hh_l{layer}"])
        bw_w, bw_b = gate_cols(raw[f"w_ih_l{layer}_r"], raw[f"b_ih_l{layer}_r"],
                               raw[f"b_hh_l{layer}_r"])
        w_cols, b_cols = [], []
        for gi in range(3):                 # i, g, o
            w_cols += [fw_w[gi], bw_w[gi]]  # [gate_fwd | gate_bwd], each H wide
            b_cols += [fw_b[gi], bw_b[gi]]
        return jnp.concatenate(w_cols, axis=1), jnp.concatenate(b_cols)

    w1, b1 = fuse_layer(0)   # (input_size, 6H)
    w2, b2 = fuse_layer(1)   # (2H, 6H)

    # Pad the layer-1 contraction dim to a 128 multiple (aligned MXU feeds; no-op at demo size).
    k_pad = (-input_size) % K_ALIGN
    if k_pad:
        w1 = jnp.pad(w1, ((0, k_pad), (0, 0)))

    # Lane-dense FC: pad output columns to OUT_PAD; pack [w2 | wfc] (shared 2H rows -> one DMA).
    wfc = jnp.zeros((2 * H, OUT_PAD), jnp.float32).at[:, :output_size].set(raw["fc_w"].T)
    bfc = jnp.zeros((OUT_PAD,), jnp.float32).at[:output_size].set(raw["fc_b"])

    return {
        "w1": w1.astype(jnp.bfloat16),
        "w2fc": jnp.concatenate([w2, wfc], axis=1).astype(jnp.bfloat16),
        "b": jnp.concatenate([b1, b2, bfc]).reshape(1, -1),   # stays f32 (tiny)
    }


def _reference(x, raw, hidden_size, num_layers=2):
    """Pure-JAX reference replicating the full PyTorch LSTM cell math (seq_len == 1, h0=c0=0)."""
    H = hidden_size

    def cell_step(inp, w_ih, w_hh, b_ih, b_hh):
        h0 = jnp.zeros((inp.shape[0], H), jnp.float32)
        c0 = jnp.zeros((inp.shape[0], H), jnp.float32)
        gates = inp @ w_ih.T + h0 @ w_hh.T + b_ih + b_hh
        i = jax.nn.sigmoid(gates[:, 0 * H:1 * H])
        f = jax.nn.sigmoid(gates[:, 1 * H:2 * H])
        g = jnp.tanh(gates[:, 2 * H:3 * H])
        o = jax.nn.sigmoid(gates[:, 3 * H:4 * H])
        c = f * c0 + i * g
        return o * jnp.tanh(c)

    inp = x
    for layer in range(num_layers):
        hf = cell_step(inp, raw[f"w_ih_l{layer}"], raw[f"w_hh_l{layer}"],
                       raw[f"b_ih_l{layer}"], raw[f"b_hh_l{layer}"])
        hb = cell_step(inp, raw[f"w_ih_l{layer}_r"], raw[f"w_hh_l{layer}_r"],
                       raw[f"b_ih_l{layer}_r"], raw[f"b_hh_l{layer}_r"])
        inp = jnp.concatenate([hf, hb], axis=-1)
    return jax.nn.sigmoid(inp @ raw["fc_w"].T + raw["fc_b"])


if __name__ == "__main__":
    # Small shapes consistent with the module's forward (real model: input=495, hidden=128, out=1).
    # hidden=64 -> each fused gate group is exactly 128 lanes; batch=8 -> full sublane occupancy.
    batch, input_size, hidden_size, output_size = 8, 128, 64, 1

    key = jax.random.PRNGKey(0)
    k_x, k_p = jax.random.split(key)
    x = jax.random.normal(k_x, (batch, input_size), jnp.float32)

    raw = init_torch_style_params(k_p, input_size, hidden_size, output_size)
    params = pack_params(raw, input_size, hidden_size, output_size)

    out = bilstm_forward(x, params, output_size)
    out = jax.block_until_ready(out)

    ref = _reference(x, raw, hidden_size)
    assert out.shape == (batch, output_size), out.shape
    # bf16 weight storage + single-pass bf16 MXU feeds (matches default TPU dot precision);
    # observed error is ~1e-3 on a (0,1) sigmoid output, tolerance widened accordingly.
    err = float(jnp.max(jnp.abs(out - ref)))
    assert jnp.allclose(out, ref, atol=2e-2, rtol=0.0), err
    print("KERNEL_OK")
</pallas_src>

<mosaic_0001>
module attributes {stable_mosaic.version = 11 : i64} {
  func.func @_bilstm_kernel(%arg0: memref<8x128xf32, #tpu.memory_space<vmem>>, %arg1: memref<128x384xbf16, #tpu.memory_space<vmem>>, %arg2: memref<128x512xbf16, #tpu.memory_space<any>>, %arg3: memref<1x896xf32, #tpu.memory_space<vmem>>, %arg4: memref<8x128xf32, #tpu.memory_space<vmem>>, %arg5: memref<128x512xbf16, #tpu.memory_space<vmem>>, %arg6: memref<!tpu.dma_semaphore, #tpu.memory_space<semaphore_mem>>) attributes {dimension_semantics = [], scalar_prefetch = 0 : i64, scratch_operands = 2 : i64, tpu.core_type = #tpu.core_type<tc>} {
    tpu.enqueue_dma source(%arg2 : memref<128x512xbf16, #tpu.memory_space<any>>) target(%arg5 : memref<128x512xbf16, #tpu.memory_space<vmem>>) target_semaphore(%arg6 : memref<!tpu.dma_semaphore, #tpu.memory_space<semaphore_mem>>)
    %c0 = arith.constant 0 : index
    %c0_0 = arith.constant 0 : index
    %0 = vector.load %arg0[%c0, %c0_0] : memref<8x128xf32, #tpu.memory_space<vmem>>, vector<8x128xf32>
    %1 = arith.truncf %0 : vector<8x128xf32> to vector<8x128xbf16>
    %c0_1 = arith.constant 0 : index
    %c0_2 = arith.constant 0 : index
    %2 = vector.load %arg1[%c0_1, %c0_2] : memref<128x384xbf16, #tpu.memory_space<vmem>>, vector<128x384xbf16>
    %cst = arith.constant dense<0.000000e+00> : vector<8x384xf32>
    %3 = tpu.matmul %1, %2, %cst {dimension_numbers = #tpu.dot_dimension_numbers<[1], [0], [0], [1], [0, 0, 1, 1], [], []>} : vector<8x128xbf16>, vector<128x384xbf16>, vector<8x384xf32> -> vector<8x384xf32>
    %c0_3 = arith.constant 0 : index
    %c0_4 = arith.constant 0 : index
    %4 = vector.load %arg3[%c0_3, %c0_4] : memref<1x896xf32, #tpu.memory_space<vmem>>, vector<1x384xf32>
    %5 = vector.broadcast %4 : vector<1x384xf32> to vector<8x384xf32>
    %6 = arith.addf %3, %5 : vector<8x384xf32>
    %7 = vector.extract_strided_slice %6 {offsets = [0, 0], sizes = [8, 128], strides = [1, 1]} : vector<8x384xf32> to vector<8x128xf32>
    %cst_5 = arith.constant 5.000000e-01 : f32
    %8 = vector.broadcast %cst_5 : f32 to vector<8x128xf32>
    %9 = arith.mulf %8, %7 : vector<8x128xf32>
    %10 = math.tanh %9 : vector<8x128xf32>
    %cst_6 = arith.constant 5.000000e-01 : f32
    %11 = vector.broadcast %cst_6 : f32 to vector<8x128xf32>
    %12 = arith.mulf %11, %10 : vector<8x128xf32>
    %cst_7 = arith.constant 5.000000e-01 : f32
    %13 = vector.broadcast %cst_7 : f32 to vector<8x128xf32>
    %14 = arith.addf %12, %13 : vector<8x128xf32>
    %15 = vector.extract_strided_slice %6 {offsets = [0, 128], sizes = [8, 128], strides = [1, 1]} : vector<8x384xf32> to vector<8x128xf32>
    %16 = math.tanh %15 : vector<8x128xf32>
    %17 = vector.extract_strided_slice %6 {offsets = [0, 256], sizes = [8, 128], strides = [1, 1]} : vector<8x384xf32> to vector<8x128xf32>
    %cst_8 = arith.constant 5.000000e-01 : f32
    %18 = vector.broadcast %cst_8 : f32 to vector<8x128xf32>
    %19 = arith.mulf %18, %17 : vector<8x128xf32>
    %20 = math.tanh %19 : vector<8x128xf32>
    %cst_9 = arith.constant 5.000000e-01 : f32
    %21 = vector.broadcast %cst_9 : f32 to vector<8x128xf32>
    %22 = arith.mulf %21, %20 : vector<8x128xf32>
    %cst_10 = arith.constant 5.000000e-01 : f32
    %23 = vector.broadcast %cst_10 : f32 to vector<8x128xf32>
    %24 = arith.addf %22, %23 : vector<8x128xf32>
    %25 = arith.mulf %14, %16 : vector<8x128xf32>
    %26 = math.tanh %25 : vector<8x128xf32>
    %27 = arith.mulf %24, %26 : vector<8x128xf32>
    tpu.wait_dma2 semaphore(%arg6 : memref<!tpu.dma_semaphore, #tpu.memory_space<semaphore_mem>>) src(%arg2 : memref<128x512xbf16, #tpu.memory_space<any>>) dst(%arg5 : memref<128x512xbf16, #tpu.memory_space<vmem>>)
    %28 = arith.truncf %27 : vector<8x128xf32> to vector<8x128xbf16>
    %c0_11 = arith.constant 0 : index
    %c0_12 = arith.constant 0 : index
    %29 = vector.load %arg5[%c0_11, %c0_12] : memref<128x512xbf16, #tpu.memory_space<vmem>>, vector<128x384xbf16>
    %cst_13 = arith.constant dense<0.000000e+00> : vector<8x384xf32>
    %30 = tpu.matmul %28, %29, %cst_13 {dimension_numbers = #tpu.dot_dimension_numbers<[1], [0], [0], [1], [0, 0, 1, 1], [], []>} : vector<8x128xbf16>, vector<128x384xbf16>, vector<8x384xf32> -> vector<8x384xf32>
    %c0_14 = arith.constant 0 : index
    %c384 = arith.constant 384 : index
    %31 = vector.load %arg3[%c0_14, %c384] : memref<1x896xf32, #tpu.memory_space<vmem>>, vector<1x384xf32>
    %32 = vector.broadcast %31 : vector<1x384xf32> to vector<8x384xf32>
    %33 = arith.addf %30, %32 : vector<8x384xf32>
    %34 = vector.extract_strided_slice %33 {offsets = [0, 0], sizes = [8, 128], strides = [1, 1]} : vector<8x384xf32> to vector<8x128xf32>
    %cst_15 = arith.constant 5.000000e-01 : f32
    %35 = vector.broadcast %cst_15 : f32 to vector<8x128xf32>
    %36 = arith.mulf %35, %34 : vector<8x128xf32>
    %37 = math.tanh %36 : vector<8x128xf32>
    %cst_16 = arith.constant 5.000000e-01 : f32
    %38 = vector.broadcast %cst_16 : f32 to vector<8x128xf32>
    %39 = arith.mulf %38, %37 : vector<8x128xf32>
    %cst_17 = arith.constant 5.000000e-01 : f32
    %40 = vector.broadcast %cst_17 : f32 to vector<8x128xf32>
    %41 = arith.addf %39, %40 : vector<8x128xf32>
    %42 = vector.extract_strided_slice %33 {offsets = [0, 128], sizes = [8, 128], strides = [1, 1]} : vector<8x384xf32> to vector<8x128xf32>
    %43 = math.tanh %42 : vector<8x128xf32>
    %44 = vector.extract_strided_slice %33 {offsets = [0, 256], sizes = [8, 128], strides = [1, 1]} : vector<8x384xf32> to vector<8x128xf32>
    %cst_18 = arith.constant 5.000000e-01 : f32
    %45 = vector.broadcast %cst_18 : f32 to vector<8x128xf32>
    %46 = arith.mulf %45, %44 : vector<8x128xf32>
    %47 = math.tanh %46 : vector<8x128xf32>
    %cst_19 = arith.constant 5.000000e-01 : f32
    %48 = vector.broadcast %cst_19 : f32 to vector<8x128xf32>
    %49 = arith.mulf %48, %47 : vector<8x128xf32>
    %cst_20 = arith.constant 5.000000e-01 : f32
    %50 = vector.broadcast %cst_20 : f32 to vector<8x128xf32>
    %51 = arith.addf %49, %50 : vector<8x128xf32>
    %52 = arith.mulf %41, %43 : vector<8x128xf32>
    %53 = math.tanh %52 : vector<8x128xf32>
    %54 = arith.mulf %51, %53 : vector<8x128xf32>
    %55 = arith.truncf %54 : vector<8x128xf32> to vector<8x128xbf16>
    %c0_21 = arith.constant 0 : index
    %c384_22 = arith.constant 384 : index
    %56 = vector.load %arg5[%c0_21, %c384_22] : memref<128x512xbf16, #tpu.memory_space<vmem>>, vector<128x128xbf16>
    %cst_23 = arith.constant dense<0.000000e+00> : vector<8x128xf32>
    %57 = tpu.matmul %55, %56, %cst_23 {dimension_numbers = #tpu.dot_dimension_numbers<[1], [0], [0], [1], [0, 0, 1, 1], [], []>} : vector<8x128xbf16>, vector<128x128xbf16>, vector<8x128xf32> -> vector<8x128xf32>
    %c0_24 = arith.constant 0 : index
    %c768 = arith.constant 768 : index
    %58 = vector.load %arg3[%c0_24, %c768] : memref<1x896xf32, #tpu.memory_space<vmem>>, vector<1x128xf32>
    %59 = vector.broadcast %58 : vector<1x128xf32> to vector<8x128xf32>
    %60 = arith.addf %57, %59 : vector<8x128xf32>
    %cst_25 = arith.constant 5.000000e-01 : f32
    %61 = vector.broadcast %cst_25 : f32 to vector<8x128xf32>
    %62 = arith.mulf %61, %60 : vector<8x128xf32>
    %63 = math.tanh %62 : vector<8x128xf32>
    %cst_26 = arith.constant 5.000000e-01 : f32
    %64 = vector.broadcast %cst_26 : f32 to vector<8x128xf32>
    %65 = arith.mulf %64, %63 : vector<8x128xf32>
    %cst_27 = arith.constant 5.000000e-01 : f32
    %66 = vector.broadcast %cst_27 : f32 to vector<8x128xf32>
    %67 = arith.addf %65, %66 : vector<8x128xf32>
    %c0_28 = arith.constant 0 : index
    %c0_29 = arith.constant 0 : index
    %68 = vector.load %arg4[%c0_28, %c0_29] : memref<8x128xf32, #tpu.memory_space<vmem>>, vector<8x128xf32>
    tpu.vector_store %arg4[%c0_28, %c0_29], %67 {strides = array<i32>} : memref<8x128xf32, #tpu.memory_space<vmem>>, vector<8x128xf32>,
    return
  }
}

</mosaic_0001>

<llo_original>
// kernel: bilstm_forward.1
$region0: #{bilstm_forward.1}
  #allocation0 [shape = 'u32[]', space=smem, size = 0x4, offset = 0x4, fixed_abs, tag = 'smem constant byte address 0x4 - core index']
  #allocation1 [shape = 'u32[144,128]{1,0:T(1,128)}', space=vmem, size = 0x12000, scoped, tag = 'internal scratch']
  #allocation2 [shape = 'bf16[128,512]{1,0:T(16,128)(2,1)}', space=vmem, size = 0x20000, scoped, tag = 'scratch operand']
  #allocation3 [shape = 's32[1]{0}', space=sflag, size = 0x4, scoped, tag = 'scratch operand']
  #allocation9 [shape = 's32[]', space=sflag, size = 0x4, offset = 0, fixed_abs, tag = 'sflag constant byte address 0x0 - dummy sync flag']
  %s0 = inlined_call_operand.hbm [shape: f32[8,128], index: 0, kind: input, shape index: {}]
  %s1 = inlined_call_operand.hbm [shape: bf16[128,384], index: 1, kind: input, shape index: {}]
  %s2 = inlined_call_operand.hbm [shape: bf16[128,512], index: 2, kind: input, shape index: {}]
  %s3 = inlined_call_operand.hbm [shape: f32[1,896], index: 3, kind: input, shape index: {}]
  %s4 = inlined_call_operand.vmem [shape: f32[8,128], index: 4, kind: output, shape index: {}]
  %s5 = sld [smem:[#allocation0]]
  $region34: #{bilstm_forward.1} parent=0
    _
  %s7 = ssub.s32 1, %s5
  %s8 = scalar_select 0, %s7, %s5
  $region1: #{bilstm_forward.1} parent=0
    #allocation4 [shape = 'u8[4096]{0}', space=vmem, size = 0x1000, scoped, tag = 'input window, operand 0, single buffered']
    #allocation5 [shape = 's32[1]{0}', space=sflag, size = 0x4, scoped, tag = 'scoped memory for bilstm_forward.1']
    #allocation6 [shape = 'u8[98304]{0}', space=vmem, size = 0x18000, scoped, tag = 'input window, operand 1, single buffered']
    #allocation7 [shape = 's32[1]{0}', space=sflag, size = 0x4, scoped, tag = 'scoped memory for bilstm_forward.1']
    #allocation8 [shape = 'u8[3584]{0}', space=vmem, size = 0x1000, scoped, tag = 'input window, operand 3, single buffered']
    #allocation10 [shape = 'u32[9]{0}', space=smem, size = 0x24, scoped, tag = 'DMA stride descriptor']
    %9 = vsyncpa [#allocation5], 0
    %10 = vsyncpa [#allocation7], 0
    // Predicated region
    $region2: #{bilstm_forward.1} parent=1 // pred_check
      _
    $region3: #{bilstm_forward.1} parent=1 // pred_check_branch
      %12 = sbr.rel (0) target = $region5
    $region4: #{bilstm_forward.1} parent=1 // pred_region
      %s14 = ssub.s32 128, 128
      %15 = vsyncadd [#allocation5], %s14
      %s17 = sshll.u32 [#allocation4], 4
      %s18 = int_to_ptr.vmem [resolvable:$true] %s17
      %20 = dma.hbm_to_vmem [thread:$0]  %s0, 128, %s18, [#allocation5]
    $region5: #{bilstm_forward.1} parent=1 // pred_fallthru
      _
    // Predicated region
    $region6: #{bilstm_forward.1} parent=1 // pred_check
      _
    $region7: #{bilstm_forward.1} parent=1 // pred_check_branch
      %22 = sbr.rel (0) target = $region9
    $region8: #{bilstm_forward.1} parent=1 // pred_region
      %s24 = ssub.s32 3072, 3072
      %25 = vsyncadd [#allocation7], %s24
      %s26 = sshll.u32 [#allocation6], 4
      %s27 = int_to_ptr.vmem [resolvable:$true] %s26
      %32 = dma.hbm_to_vmem [thread:$0]  %s1, 3072, %s27, [#allocation7], 192, 192, 12
    $region9: #{bilstm_forward.1} parent=1 // pred_fallthru
      _
    // Predicated region
    $region10: #{bilstm_forward.1} parent=1 // pred_check
      _
    $region11: #{bilstm_forward.1} parent=1 // pred_check_branch
      %34 = sbr.rel (0) target = $region13
    $region12: #{bilstm_forward.1} parent=1 // pred_region
      %s36 = ssub.s32 112, 112
      %37 = vsyncadd [#allocation7], %s36
      %s39 = sshll.u32 [#allocation8], 4
      %s40 = int_to_ptr.vmem [resolvable:$true] %s39
      %42 = dma.hbm_to_vmem [thread:$0]  %s3, 112, %s40, [#allocation7]
    $region13: #{bilstm_forward.1} parent=1 // pred_fallthru
      _
    // Predicated region
    $region14: #{bilstm_forward.1} parent=1 // pred_check
      _
    $region15: #{bilstm_forward.1} parent=1 // pred_check_branch
      %44 = sbr.rel (0) target = $region17
    $region16: #{bilstm_forward.1} parent=1 // pred_region
      %45 = dma.done [#allocation5], 128
    $region17: #{bilstm_forward.1} parent=1 // pred_fallthru
      _
    // Predicated region
    $region18: #{bilstm_forward.1} parent=1 // pred_check
      _
    $region19: #{bilstm_forward.1} parent=1 // pred_check_branch
      %47 = sbr.rel (0) target = $region21
    $region20: #{bilstm_forward.1} parent=1 // pred_region
      %48 = dma.done [#allocation7], 3072
    $region21: #{bilstm_forward.1} parent=1 // pred_fallthru
      _
    // Predicated region
    $region22: #{bilstm_forward.1} parent=1 // pred_check
      _
    $region23: #{bilstm_forward.1} parent=1 // pred_check_branch
      %50 = sbr.rel (0) target = $region25
    $region24: #{bilstm_forward.1} parent=1 // pred_region
      %51 = dma.done [#allocation7], 112
    $region25: #{bilstm_forward.1} parent=1 // pred_fallthru
      _
    %s54 = sshll.u32 1, 14
    %s55 = sxor.u32 4294967295, %s54
    %s57 = sld [smem:[#allocation0]]
    %s58 = sadd.s32 2, %s57
    %s60 = sshll.u32 7, 26
    %s61 = sxor.u32 4294967295, %s60
    %s62 = sand.u32 0, %s61
    %s63 = sshll.u32 %s58, 26
    %s64 = sor.u32 %s62, %s63
    %s65 = sshll.u32 [#allocation2], 4
    %s66 = int_to_ptr.vmem [resolvable:$true] %s65
    %69 = sst [smem:[#allocation10]] 512
    %s70 = scalar_lea.smem [#allocation10], 1
    %71 = sst [smem:[%s70]] 512
    %s72 = scalar_lea.smem [#allocation10], 2
    %73 = sst [smem:[%s72]] 4
    %s74 = scalar_lea.smem [#allocation10], 3
    %75 = sst [smem:[%s74]] 64
    %s76 = scalar_lea.smem [#allocation10], 4
    %77 = sst [smem:[%s76]] 128
    %s78 = scalar_lea.smem [#allocation10], 5
    %79 = sst [smem:[%s78]] 2
    %s80 = scalar_lea.smem [#allocation10], 6
    %81 = sst [smem:[%s80]] 256
    %s82 = scalar_lea.smem [#allocation10], 7
    %83 = sst [smem:[%s82]] 64
    %s84 = scalar_lea.smem [#allocation10], 8
    %85 = sst [smem:[%s84]] 4
    %87 = dma.general %s2, 4096, %s66, [#allocation3], [#allocation9], [#allocation10], %s64, 0
    %v88 = vld [vmem:[#allocation4] sm:$0xff]
    %v89 = vpack.c.bf16 %v88, %v88
    %v90 = vld [vmem:[#allocation6] sm:$0xff]
    %v91 = vld [vmem:[#allocation6 + $0x8] sm:$0xf]
    %v92 = vld [vmem:[#allocation6 + $0xc] sm:$0xff]
    %v93 = vld [vmem:[#allocation6 + $0x14] sm:$0xf]
    %v94 = vld [vmem:[#allocation6 + $0x18] sm:$0xff]
    %v95 = vld [vmem:[#allocation6 + $0x20] sm:$0xf]
    %v96 = vld [vmem:[#allocation6 + $0x24] sm:$0xff]
    %v97 = vld [vmem:[#allocation6 + $0x2c] sm:$0xf]
    %v98 = vld [vmem:[#allocation6 + $0x30] sm:$0xff]
    %v99 = vld [vmem:[#allocation6 + $0x38] sm:$0xf]
    %v100 = vld [vmem:[#allocation6 + $0x3c] sm:$0xff]
    %v101 = vld [vmem:[#allocation6 + $0x44] sm:$0xf]
    %v102 = vld [vmem:[#allocation6 + $0x48] sm:$0xff]
    %v103 = vld [vmem:[#allocation6 + $0x50] sm:$0xf]
    %v104 = vld [vmem:[#allocation6 + $0x54] sm:$0xff]
    %v105 = vld [vmem:[#allocation6 + $0x5c] sm:$0xf]
    %v106 = vld [vmem:[#allocation6 + $0x60] sm:$0xff]
    %v107 = vld [vmem:[#allocation6 + $0x68] sm:$0xf]
    %v108 = vld [vmem:[#allocation6 + $0x6c] sm:$0xff]
    %v109 = vld [vmem:[#allocation6 + $0x74] sm:$0xf]
    %v110 = vld [vmem:[#allocation6 + $0x78] sm:$0xff]
    %v111 = vld [vmem:[#allocation6 + $0x80] sm:$0xf]
    %v112 = vld [vmem:[#allocation6 + $0x84] sm:$0xff]
    %v113 = vld [vmem:[#allocation6 + $0x8c] sm:$0xf]
    %v114 = vld [vmem:[#allocation6 + $0x90] sm:$0xff]
    %v115 = vld [vmem:[#allocation6 + $0x98] sm:$0xf]
    %v116 = vld [vmem:[#allocation6 + $0x9c] sm:$0xff]
    %v117 = vld [vmem:[#allocation6 + $0xa4] sm:$0xf]
    %v118 = vld [vmem:[#allocation6 + $0xa8] sm:$0xff]
    %v119 = vld [vmem:[#allocation6 + $0xb0] sm:$0xf]
    %v120 = vld [vmem:[#allocation6 + $0xb4] sm:$0xff]
    %v121 = vld [vmem:[#allocation6 + $0xbc] sm:$0xf]
    %v122 = vld [vmem:[#allocation8] sm:$0x7]
    %v124 = vlaneseq
    %v125 = vshrl.u32 %v124, 7
    %v126 = vsub.s32 0, %v125
    %v127 = vrot.slane %v122, %v126
    %v128 = vlaneseq
    %v129 = vshrl.u32 %v128, 7
    %v130 = vsub.s32 1, %v129
    %v131 = vrot.slane %v122, %v130
    %v132 = vlaneseq
    %v133 = vshrl.u32 %v132, 7
    %v134 = vsub.s32 2, %v133
    %v135 = vrot.slane %v122, %v134
    %v171 = vunpack.c.l.b16 %v90
    %v172 = vunpack.c.h.b16 %v90
    %v173 = vunpack.c.l.b16 %v91
    %v174 = vunpack.c.l.b16 %v92
    %v175 = vunpack.c.h.b16 %v92
    %v176 = vunpack.c.l.b16 %v93
    %v177 = vunpack.c.l.b16 %v94
    %v178 = vunpack.c.h.b16 %v94
    %v179 = vunpack.c.l.b16 %v95
    %v180 = vunpack.c.l.b16 %v96
    %v181 = vunpack.c.h.b16 %v96
    %v182 = vunpack.c.l.b16 %v97
    %v183 = vunpack.c.l.b16 %v98
    %v184 = vunpack.c.h.b16 %v98
    %v185 = vunpack.c.l.b16 %v99
    %v186 = vunpack.c.l.b16 %v100
    %v187 = vunpack.c.h.b16 %v100
    %v188 = vunpack.c.l.b16 %v101
    %v189 = vunpack.c.l.b16 %v102
    %v190 = vunpack.c.h.b16 %v102
    %v191 = vunpack.c.l.b16 %v103
    %v192 = vunpack.c.l.b16 %v104
    %v193 = vunpack.c.h.b16 %v104
    %v194 = vunpack.c.l.b16 %v105
    %v195 = vunpack.c.l.b16 %v106
    %v196 = vunpack.c.h.b16 %v106
    %v197 = vunpack.c.l.b16 %v107
    %v198 = vunpack.c.l.b16 %v108
    %v199 = vunpack.c.h.b16 %v108
    %v200 = vunpack.c.l.b16 %v109
    %v201 = vunpack.c.l.b16 %v110
    %v202 = vunpack.c.h.b16 %v110
    %v203 = vunpack.c.l.b16 %v111
    %v204 = vunpack.c.l.b16 %v112
    %v205 = vunpack.c.h.b16 %v112
    %v206 = vunpack.c.l.b16 %v113
    %v207 = vunpack.c.l.b16 %v114
    %v208 = vunpack.c.h.b16 %v114
    %v209 = vunpack.c.l.b16 %v115
    %v210 = vunpack.c.l.b16 %v116
    %v211 = vunpack.c.h.b16 %v116
    %v212 = vunpack.c.l.b16 %v117
    %v213 = vunpack.c.l.b16 %v118
    %v214 = vunpack.c.h.b16 %v118
    %v215 = vunpack.c.l.b16 %v119
    %v216 = vunpack.c.l.b16 %v120
    %v217 = vunpack.c.h.b16 %v120
    %v218 = vunpack.c.l.b16 %v121
    %v219 = vpack.c.b16 %v174, %v171
    %v220 = vpack.c.b16 %v175, %v172
    %v221 = vpack.c.b16 %v176, %v173
    %v222 = vpack.c.b16 %v180, %v177
    %v223 = vpack.c.b16 %v181, %v178
    %v224 = vpack.c.b16 %v182, %v179
    %v225 = vpack.c.b16 %v186, %v183
    %v226 = vpack.c.b16 %v187, %v184
    %v227 = vpack.c.b16 %v188, %v185
    %v228 = vpack.c.b16 %v192, %v189
    %v229 = vpack.c.b16 %v193, %v190
    %v230 = vpack.c.b16 %v194, %v191
    %v231 = vpack.c.b16 %v198, %v195
    %v232 = vpack.c.b16 %v199, %v196
    %v233 = vpack.c.b16 %v200, %v197
    %v234 = vpack.c.b16 %v204, %v201
    %v235 = vpack.c.b16 %v205, %v202
    %v236 = vpack.c.b16 %v206, %v203
    %v237 = vpack.c.b16 %v210, %v207
    %v238 = vpack.c.b16 %v211, %v208
    %v239 = vpack.c.b16 %v212, %v209
    %v240 = vpack.c.b16 %v216, %v213
    %v241 = vpack.c.b16 %v217, %v214
    %v242 = vpack.c.b16 %v218, %v215
    %267 = vmatprep.subr.bf16.mxu0 %v220
    %268 = vmatpush1.bf16.msra.mxu0 %v219
    %269 = vmatprep.subr.bf16.mxu0 %v223
    %270 = vmatpush1.bf16.msra.mxu0 %v222
    %271 = vmatprep.subr.bf16.mxu0 %v226
    %272 = vmatpush1.bf16.msra.mxu0 %v225
    %273 = vmatprep.subr.bf16.mxu0 %v229
    %274 = vmatpush1.bf16.msra.mxu0 %v228
    %275 = vmatprep.subr.bf16.mxu0 %v232
    %276 = vmatpush1.bf16.msra.mxu0 %v231
    %277 = vmatprep.subr.bf16.mxu0 %v235
    %278 = vmatpush1.bf16.msra.mxu0 %v234
    %279 = vmatprep.subr.bf16.mxu0 %v238
    %280 = vmatpush1.bf16.msra.mxu0 %v237
    %281 = vmatprep.subr.bf16.mxu0 %v241
    %282 = vmatpush1.bf16.msra.mxu0 %v240
    %283 = vmatprep.subr.bf16.mxu0 0
    %284 = vmatpush1.bf16.msra.mxu0 0
    %285 = vmatprep.subr.bf16.mxu0 0
    %286 = vmatpush1.bf16.msra.mxu0 0
    %287 = vmatprep.subr.bf16.mxu0 0
    %288 = vmatpush1.bf16.msra.mxu0 0
    %289 = vmatprep.subr.bf16.mxu0 0
    %290 = vmatpush1.bf16.msra.mxu0 0
    %291 = vmatprep.subr.bf16.mxu0 0
    %292 = vmatpush1.bf16.msra.mxu0 0
    %293 = vmatprep.subr.bf16.mxu0 0
    %294 = vmatpush1.bf16.msra.mxu0 0
    %295 = vmatprep.subr.bf16.mxu0 0
    %296 = vmatpush1.bf16.msra.mxu0 0
    %297 = vmatprep.subr.bf16.mxu0 0
    %298 = vmatpush1.bf16.msra.mxu0 0
    %299 = vmatprep.mubr.bf16.mxu0 0
    %300 = vmatmul.mubr.bf16.gmra.mrb[0].mxu0 %v89
    %v301 = vpop.f32.mrb[0].mxu0
    %v302 = vadd.f32 %v127, %v301
    %v303 = vpop.f32.mrb[0].mxu0
    %v304 = vadd.f32 %v131, %v303
    %v305 = vpop.f32.mrb[0].mxu0
    %v306 = vpop.f32.mrb[0].mxu0
    %307 = vdwg.mxu0
    %308 = vmatprep.subr.bf16.mxu0 0
    %309 = vmatpush1.bf16.msra.mxu0 %v221
    %310 = vmatprep.subr.bf16.mxu0 0
    %311 = vmatpush1.bf16.msra.mxu0 %v224
    %312 = vmatprep.subr.bf16.mxu0 0
    %313 = vmatpush1.bf16.msra.mxu0 %v227
    %314 = vmatprep.subr.bf16.mxu0 0
    %315 = vmatpush1.bf16.msra.mxu0 %v230
    %316 = vmatprep.subr.bf16.mxu0 0
    %317 = vmatpush1.bf16.msra.mxu0 %v233
    %318 = vmatprep.subr.bf16.mxu0 0
    %319 = vmatpush1.bf16.msra.mxu0 %v236
    %320 = vmatprep.subr.bf16.mxu0 0
    %321 = vmatpush1.bf16.msra.mxu0 %v239
    %322 = vmatprep.subr.bf16.mxu0 0
    %323 = vmatpush1.bf16.msra.mxu0 %v242
    %324 = vmatprep.subr.bf16.mxu0 0
    %325 = vmatpush1.bf16.msra.mxu0 0
    %326 = vmatprep.subr.bf16.mxu0 0
    %327 = vmatpush1.bf16.msra.mxu0 0
    %328 = vmatprep.subr.bf16.mxu0 0
    %329 = vmatpush1.bf16.msra.mxu0 0
    %330 = vmatprep.subr.bf16.mxu0 0
    %331 = vmatpush1.bf16.msra.mxu0 0
    %332 = vmatprep.subr.bf16.mxu0 0
    %333 = vmatpush1.bf16.msra.mxu0 0
    %334 = vmatprep.subr.bf16.mxu0 0
    %335 = vmatpush1.bf16.msra.mxu0 0
    %336 = vmatprep.subr.bf16.mxu0 0
    %337 = vmatpush1.bf16.msra.mxu0 0
    %338 = vmatprep.subr.bf16.mxu0 0
    %339 = vmatpush1.bf16.msra.mxu0 0
    %340 = vmatprep.mubr.bf16.mxu0 0
    %341 = vmatmul.mubr.bf16.gmra.mrb[0].mxu0 %v89
    %v342 = vpop.f32.mrb[0].mxu0
    %v343 = vadd.f32 %v135, %v342
    %v344 = vpop.f32.mrb[0].mxu0
    %v345 = vpop.f32.mrb[0].mxu0
    %v346 = vpop.f32.mrb[0].mxu0
    %347 = vdwg.mxu0
    %v348 = vmul.f32 %v302, 0.5
    %v349 = vtanh.pop %v348
    %v350 = vmul.f32 %v349, 0.5
    %v351 = vadd.f32 %v350, 0.5
    %v352 = vtanh.pop %v304
    %v353 = vmul.f32 %v343, 0.5
    %v354 = vtanh.pop %v353
    %v355 = vmul.f32 %v354, 0.5
    %v356 = vadd.f32 %v355, 0.5
    %v357 = vmul.f32 %v351, %v352
    %v358 = vtanh.pop %v357
    %v359 = vmul.f32 %v356, %v358
    %s360 = smul.u32 4, 16
    %s361 = smul.u32 %s360, 4
    %s362 = sshll.u32 %s361, 4
    %363 = dma.done [#allocation3], %s362
    %v364 = vpack.c.bf16 %v359, %v359
    %v365 = vld [vmem:[#allocation2] sm:$0xff]
    %v366 = vld [vmem:[#allocation2 + $0x8] sm:$0xff]
    %v367 = vld [vmem:[#allocation2 + $0x10] sm:$0xff]
    %v368 = vld [vmem:[#allocation2 + $0x20] sm:$0xff]
    %v369 = vld [vmem:[#allocation2 + $0x28] sm:$0xff]
    %v370 = vld [vmem:[#allocation2 + $0x30] sm:$0xff]
    %v371 = vld [vmem:[#allocation2 + $0x40] sm:$0xff]
    %v372 = vld [vmem:[#allocation2 + $0x48] sm:$0xff]
    %v373 = vld [vmem:[#allocation2 + $0x50] sm:$0xff]
    %v374 = vld [vmem:[#allocation2 + $0x60] sm:$0xff]
    %v375 = vld [vmem:[#allocation2 + $0x68] sm:$0xff]
    %v376 = vld [vmem:[#allocation2 + $0x70] sm:$0xff]
    %v377 = vld [vmem:[#allocation2 + $0x80] sm:$0xff]
    %v378 = vld [vmem:[#allocation2 + $0x88] sm:$0xff]
    %v379 = vld [vmem:[#allocation2 + $0x90] sm:$0xff]
    %v380 = vld [vmem:[#allocation2 + $0xa0] sm:$0xff]
    %v381 = vld [vmem:[#allocation2 + $0xa8] sm:$0xff]
    %v382 = vld [vmem:[#allocation2 + $0xb0] sm:$0xff]
    %v383 = vld [vmem:[#allocation2 + $0xc0] sm:$0xff]
    %v384 = vld [vmem:[#allocation2 + $0xc8] sm:$0xff]
    %v385 = vld [vmem:[#allocation2 + $0xd0] sm:$0xff]
    %v386 = vld [vmem:[#allocation2 + $0xe0] sm:$0xff]
    %v387 = vld [vmem:[#allocation2 + $0xe8] sm:$0xff]
    %v388 = vld [vmem:[#allocation2 + $0xf0] sm:$0xff]
    %v389 = vld [vmem:[#allocation8 + $0x3] sm:$0x7]
    %v391 = vlaneseq
    %v392 = vshrl.u32 %v391, 7
    %v393 = vsub.s32 0, %v392
    %v394 = vrot.slane %v389, %v393
    %v395 = vlaneseq
    %v396 = vshrl.u32 %v395, 7
    %v397 = vsub.s32 1, %v396
    %v398 = vrot.slane %v389, %v397
    %v399 = vlaneseq
    %v400 = vshrl.u32 %v399, 7
    %v401 = vsub.s32 2, %v400
    %v402 = vrot.slane %v389, %v401
    %406 = vmatprep.subr.bf16.mxu0 %v366
    %407 = vmatpush1.bf16.msra.mxu0 %v365
    %408 = vmatprep.subr.bf16.mxu0 %v369
    %409 = vmatpush1.bf16.msra.mxu0 %v368
    %410 = vmatprep.subr.bf16.mxu0 %v372
    %411 = vmatpush1.bf16.msra.mxu0 %v371
    %412 = vmatprep.subr.bf16.mxu0 %v375
    %413 = vmatpush1.bf16.msra.mxu0 %v374
    %414 = vmatprep.subr.bf16.mxu0 %v378
    %415 = vmatpush1.bf16.msra.mxu0 %v377
    %416 = vmatprep.subr.bf16.mxu0 %v381
    %417 = vmatpush1.bf16.msra.mxu0 %v380
    %418 = vmatprep.subr.bf16.mxu0 %v384
    %419 = vmatpush1.bf16.msra.mxu0 %v383
    %420 = vmatprep.subr.bf16.mxu0 %v387
    %421 = vmatpush1.bf16.msra.mxu0 %v386
    %422 = vmatprep.subr.bf16.mxu0 0
    %423 = vmatpush1.bf16.msra.mxu0 0
    %424 = vmatprep.subr.bf16.mxu0 0
    %425 = vmatpush1.bf16.msra.mxu0 0
    %426 = vmatprep.subr.bf16.mxu0 0
    %427 = vmatpush1.bf16.msra.mxu0 0
    %428 = vmatprep.subr.bf16.mxu0 0
    %429 = vmatpush1.bf16.msra.mxu0 0
    %430 = vmatprep.subr.bf16.mxu0 0
    %431 = vmatpush1.bf16.msra.mxu0 0
    %432 = vmatprep.subr.bf16.mxu0 0
    %433 = vmatpush1.bf16.msra.mxu0 0
    %434 = vmatprep.subr.bf16.mxu0 0
    %435 = vmatpush1.bf16.msra.mxu0 0
    %436 = vmatprep.subr.bf16.mxu0 0
    %437 = vmatpush1.bf16.msra.mxu0 0
    %438 = vmatprep.mubr.bf16.mxu0 0
    %439 = vmatmul.mubr.bf16.gmra.mrb[0].mxu0 %v364
    %v440 = vpop.f32.mrb[0].mxu0
    %v441 = vadd.f32 %v394, %v440
    %v442 = vpop.f32.mrb[0].mxu0
    %v443 = vadd.f32 %v398, %v442
    %v444 = vpop.f32.mrb[0].mxu0
    %v445 = vpop.f32.mrb[0].mxu0
    %446 = vdwg.mxu0
    %447 = vmatprep.subr.bf16.mxu0 0
    %448 = vmatpush1.bf16.msra.mxu0 %v367
    %449 = vmatprep.subr.bf16.mxu0 0
    %450 = vmatpush1.bf16.msra.mxu0 %v370
    %451 = vmatprep.subr.bf16.mxu0 0
    %452 = vmatpush1.bf16.msra.mxu0 %v373
    %453 = vmatprep.subr.bf16.mxu0 0
    %454 = vmatpush1.bf16.msra.mxu0 %v376
    %455 = vmatprep.subr.bf16.mxu0 0
    %456 = vmatpush1.bf16.msra.mxu0 %v379
    %457 = vmatprep.subr.bf16.mxu0 0
    %458 = vmatpush1.bf16.msra.mxu0 %v382
    %459 = vmatprep.subr.bf16.mxu0 0
    %460 = vmatpush1.bf16.msra.mxu0 %v385
    %461 = vmatprep.subr.bf16.mxu0 0
    %462 = vmatpush1.bf16.msra.mxu0 %v388
    %463 = vmatprep.subr.bf16.mxu0 0
    %464 = vmatpush1.bf16.msra.mxu0 0
    %465 = vmatprep.subr.bf16.mxu0 0
    %466 = vmatpush1.bf16.msra.mxu0 0
    %467 = vmatprep.subr.bf16.mxu0 0
    %468 = vmatpush1.bf16.msra.mxu0 0
    %469 = vmatprep.subr.bf16.mxu0 0
    %470 = vmatpush1.bf16.msra.mxu0 0
    %471 = vmatprep.subr.bf16.mxu0 0
    %472 = vmatpush1.bf16.msra.mxu0 0
    %473 = vmatprep.subr.bf16.mxu0 0
    %474 = vmatpush1.bf16.msra.mxu0 0
    %475 = vmatprep.subr.bf16.mxu0 0
    %476 = vmatpush1.bf16.msra.mxu0 0
    %477 = vmatprep.subr.bf16.mxu0 0
    %478 = vmatpush1.bf16.msra.mxu0 0
    %479 = vmatprep.mubr.bf16.mxu0 0
    %480 = vmatmul.mubr.bf16.gmra.mrb[0].mxu0 %v364
    %v481 = vpop.f32.mrb[0].mxu0
    %v482 = vadd.f32 %v402, %v481
    %v483 = vpop.f32.mrb[0].mxu0
    %v484 = vpop.f32.mrb[0].mxu0
    %v485 = vpop.f32.mrb[0].mxu0
    %486 = vdwg.mxu0
    %v487 = vmul.f32 %v441, 0.5
    %v488 = vtanh.pop %v487
    %v489 = vmul.f32 %v488, 0.5
    %v490 = vadd.f32 %v489, 0.5
    %v491 = vtanh.pop %v443
    %v492 = vmul.f32 %v482, 0.5
    %v493 = vtanh.pop %v492
    %v494 = vmul.f32 %v493, 0.5
    %v495 = vadd.f32 %v494, 0.5
    %v496 = vmul.f32 %v490, %v491
    %v497 = vtanh.pop %v496
    %v498 = vmul.f32 %v495, %v497
    %v499 = vpack.c.bf16 %v498, %v498
    %v500 = vld [vmem:[#allocation2 + $0x18] sm:$0xff]
    %v501 = vld [vmem:[#allocation2 + $0x38] sm:$0xff]
    %v502 = vld [vmem:[#allocation2 + $0x58] sm:$0xff]
    %v503 = vld [vmem:[#allocation2 + $0x78] sm:$0xff]
    %v504 = vld [vmem:[#allocation2 + $0x98] sm:$0xff]
    %v505 = vld [vmem:[#allocation2 + $0xb8] sm:$0xff]
    %v506 = vld [vmem:[#allocation2 + $0xd8] sm:$0xff]
    %v507 = vld [vmem:[#allocation2 + $0xf8] sm:$0xff]
    %v508 = vld [vmem:[#allocation8 + $0x6] sm:$0x1]
    %v510 = vlaneseq
    %v511 = vshrl.u32 %v510, 7
    %v512 = vsub.s32 0, %v511
    %v513 = vrot.slane %v508, %v512
    %515 = vmatprep.subr.bf16.mxu0 0
    %516 = vmatpush1.bf16.msra.mxu0 %v500
    %517 = vmatprep.subr.bf16.mxu0 0
    %518 = vmatpush1.bf16.msra.mxu0 %v501
    %519 = vmatprep.subr.bf16.mxu0 0
    %520 = vmatpush1.bf16.msra.mxu0 %v502
    %521 = vmatprep.subr.bf16.mxu0 0
    %522 = vmatpush1.bf16.msra.mxu0 %v503
    %523 = vmatprep.subr.bf16.mxu0 0
    %524 = vmatpush1.bf16.msra.mxu0 %v504
    %525 = vmatprep.subr.bf16.mxu0 0
    %526 = vmatpush1.bf16.msra.mxu0 %v505
    %527 = vmatprep.subr.bf16.mxu0 0
    %528 = vmatpush1.bf16.msra.mxu0 %v506
    %529 = vmatprep.subr.bf16.mxu0 0
    %530 = vmatpush1.bf16.msra.mxu0 %v507
    %531 = vmatprep.subr.bf16.mxu0 0
    %532 = vmatpush1.bf16.msra.mxu0 0
    %533 = vmatprep.subr.bf16.mxu0 0
    %534 = vmatpush1.bf16.msra.mxu0 0
    %535 = vmatprep.subr.bf16.mxu0 0
    %536 = vmatpush1.bf16.msra.mxu0 0
    %537 = vmatprep.subr.bf16.mxu0 0
    %538 = vmatpush1.bf16.msra.mxu0 0
    %539 = vmatprep.subr.bf16.mxu0 0
    %540 = vmatpush1.bf16.msra.mxu0 0
    %541 = vmatprep.subr.bf16.mxu0 0
    %542 = vmatpush1.bf16.msra.mxu0 0
    %543 = vmatprep.subr.bf16.mxu0 0
    %544 = vmatpush1.bf16.msra.mxu0 0
    %545 = vmatprep.subr.bf16.mxu0 0
    %546 = vmatpush1.bf16.msra.mxu0 0
    %547 = vmatprep.mubr.bf16.mxu0 0
    %548 = vmatmul.mubr.bf16.gmra.mrb[0].mxu0 %v499
    %v549 = vpop.f32.mrb[0].mxu0
    %v550 = vadd.f32 %v513, %v549
    %v551 = vpop.f32.mrb[0].mxu0
    %v552 = vpop.f32.mrb[0].mxu0
    %v553 = vpop.f32.mrb[0].mxu0
    %554 = vdwg.mxu0
    %v555 = vmul.f32 %v550, 0.5
    %v556 = vtanh.pop %v555
    %v557 = vmul.f32 %v556, 0.5
    %v558 = vadd.f32 %v557, 0.5
    %559 = vst [vmem:[%s4] sm:$0xff] %v558
    // Predicated region
    $region26: #{bilstm_forward.1} parent=1 // pred_check
      _
    $region27: #{bilstm_forward.1} parent=1 // pred_check_branch
      %561 = sbr.rel (0) target = $region29
    $region28: #{bilstm_forward.1} parent=1 // pred_region
      _
    $region29: #{bilstm_forward.1} parent=1 // pred_fallthru
      _
    // Predicated region
    $region30: #{bilstm_forward.1} parent=1 // pred_check
      _
    $region31: #{bilstm_forward.1} parent=1 // pred_check_branch
      %563 = sbr.rel (0) target = $region33
    $region32: #{bilstm_forward.1} parent=1 // pred_region
      _
    $region33: #{bilstm_forward.1} parent=1 // pred_fallthru
      _
    %564 = vsyncpa [#allocation5], 1
    %565 = vsyncpa [#allocation7], 1
  %566 = vsyncmov [#allocation3]
  %s567 = vpop.sfrf %566
  %p568 = scmp.eq.s32.totalorder %s567, 0
  %p569 = pneg %p568
  %571 = shalt.err (%p569)

</llo_original>
